<compile_context>
chip_gen: v7x
topology: tpu7x:2x2x1
jax: 0.10.0
libtpu: 0.0.40
codegen_flags: <defaults>
</compile_context>

<pallas_src>
import jax
import jax.numpy as jnp
from jax.experimental import pallas as pl
from jax.experimental.pallas import tpu as pltpu

NUM_CLASSES = 3
IN_DIMS = (228, 227, 620)          # raw modality input dims
PAD_DIMS = (256, 256, 640)         # lane-padded K dims (multiples of 128)
K_TOTAL = sum(PAD_DIMS)            # 1152


# ----------------------------------------------------------------------------
# Fused Pallas kernel: 3 encoders + MML fusion + GNN MLP + masked CE loss
# ----------------------------------------------------------------------------
def fused_adni_kernel(
    xcat_ref,            # (B, 1152)  concatenated, lane-padded modality inputs
    fmask_ref,           # (B, 3E)    per-column modality flag mask
    f1_ref, f2_ref, f3_ref,   # (B, 1) modality flags
    yflag_ref,           # (B, 1)     label flag
    y1h_ref,             # (B, 3)     one-hot labels
    w0_ref,              # (1152, 3E) block-diagonal encoder layer-0 weights
    b0_ref,              # (1, 3E)    concatenated layer-0 biases
    w1_ref,              # (3E, E)    stacked (layer-1 ∘ mapper) weights
    b1s_ref,             # (3, E)     per-modality (layer-1 ∘ mapper) biases
    wg_ref,              # (L, E, E)  GNN weights
    bg_ref,              # (L, 1, E)  GNN biases
    wc_ref,              # (E, 3)     classifier weight
    bc_ref,              # (1, 3)     classifier bias
    loss_ref,            # (1, 1) SMEM scalar output
):
    # --- all three FFNEncoder first layers in one block-diagonal matmul ---
    h = jnp.dot(xcat_ref[...], w0_ref[...],
                preferred_element_type=jnp.float32) + b0_ref[...]    # (B, 3E)
    h = jnp.maximum(h, 0.0)
    # flag-mask each modality's column block (dropout: identity, eval mode)
    h = h * fmask_ref[...]

    # --- folded (encoder layer-1 ∘ mapper) + masked-sum fusion, one matmul ---
    fused = jnp.dot(h, w1_ref[...], preferred_element_type=jnp.float32)  # (B, E)
    f1 = f1_ref[...]
    f2 = f2_ref[...]
    f3 = f3_ref[...]
    fused = (fused
             + f1 * b1s_ref[0:1, :]
             + f2 * b1s_ref[1:2, :]
             + f3 * b1s_ref[2:3, :])

    # MML: masked mean over available modalities
    cnt = f1 + f2 + f3                                   # (B, 1)
    z = fused / jnp.maximum(cnt, 1.0)                    # (B, E)

    # --- GNN-style Linear+ReLU stack (static unroll over layer axis) ---
    num_gnn_layers = wg_ref.shape[0]
    for layer in range(num_gnn_layers):
        z = jnp.dot(z, wg_ref[layer],
                    preferred_element_type=jnp.float32) + bg_ref[layer]
        z = jnp.maximum(z, 0.0)

    logits = jnp.dot(z, wc_ref[...],
                     preferred_element_type=jnp.float32) + bc_ref[...]   # (B, 3)

    # --- masked cross-entropy over samples with label_flag != 0 ---
    m = jnp.max(logits, axis=-1, keepdims=True)
    lse = m + jnp.log(jnp.sum(jnp.exp(logits - m), axis=-1, keepdims=True))
    ll = jnp.sum(y1h_ref[...] * logits, axis=-1, keepdims=True)
    yflag = yflag_ref[...]                               # (B, 1)
    per_sample = (lse - ll) * yflag
    denom = jnp.maximum(jnp.sum(yflag), 1.0)
    loss_ref[0, 0] = jnp.sum(per_sample) / denom         # scalar -> SMEM


def run_fused(args):
    in_specs = [pl.BlockSpec(memory_space=pltpu.MemorySpace.VMEM)
                for _ in range(len(args))]
    return pl.pallas_call(
        fused_adni_kernel,
        out_shape=jax.ShapeDtypeStruct((1, 1), jnp.float32),
        in_specs=in_specs,
        out_specs=pl.BlockSpec(memory_space=pltpu.MemorySpace.SMEM),
    )(*args)


# ----------------------------------------------------------------------------
# Parameter construction (deterministic, synthetic) + kernel-ready folding
# ----------------------------------------------------------------------------
def make_linear(key, fan_in, fan_out):
    kw, kb = jax.random.split(key)
    scale = 1.0 / jnp.sqrt(jnp.float32(fan_in))
    w = jax.random.uniform(kw, (fan_in, fan_out), jnp.float32, -scale, scale)
    b = jax.random.uniform(kb, (1, fan_out), jnp.float32, -scale, scale)
    return w, b


def make_params(key, embedding_size, ffn_layers, gnn_layers, num_classes=NUM_CLASSES):
    # TODO(synk): ffn_layers is fixed to 2 linears (in->E, E->E) in this build.
    del ffn_layers
    E = embedding_size
    keys = jax.random.split(key, 16)

    w0_blocks, b0_list, w1_list, b1_list = [], [], [], []
    for idx, (din, dpad) in enumerate(zip(IN_DIMS, PAD_DIMS)):
        w0, b0 = make_linear(keys[4 * idx + 0], din, E)
        w1, b1 = make_linear(keys[4 * idx + 1], E, E)
        wm, bm = make_linear(keys[4 * idx + 2], E, E)
        # Fold the mapper into the second linear: y = (x@W1 + b1)@Wm + bm
        w1f = w1 @ wm
        b1f = b1 @ wm + bm
        # Zero-pad K so matmul operands are lane-aligned; padded rows multiply
        # against zero-padded input columns -> numerically identical.
        w0_blocks.append(jnp.pad(w0, ((0, dpad - din), (0, 0))))   # (dpad, E)
        b0_list.append(b0)                                          # (1, E)
        w1_list.append(w1f)                                         # (E, E)
        b1_list.append(b1f)                                         # (1, E)

    # Block-diagonal first-layer weight: (1152, 3E); one matmul for 3 encoders.
    w0_bd = jax.scipy.linalg.block_diag(*w0_blocks)
    b0_cat = jnp.concatenate(b0_list, axis=1)                        # (1, 3E)
    w1_cat = jnp.concatenate(w1_list, axis=0)                        # (3E, E)
    b1_stack = jnp.concatenate(b1_list, axis=0)                      # (3, E)

    wg_list, bg_list = [], []
    for layer in range(gnn_layers):
        w, b = make_linear(jax.random.fold_in(keys[12], layer), E, E)
        wg_list.append(w)
        bg_list.append(b)
    wc, bc = make_linear(keys[13], E, num_classes)

    return dict(
        w0_bd=w0_bd, b0_cat=b0_cat, w1_cat=w1_cat, b1_stack=b1_stack,
        wg=jnp.stack(wg_list, axis=0),    # (L, E, E)
        bg=jnp.stack(bg_list, axis=0),    # (L, 1, E)
        wc=wc,                            # (E, C)
        bc=bc,                            # (1, C)
    )


# ----------------------------------------------------------------------------
# Full ADNIBackbone.forward equivalent (jitted: prep ops + one pallas_call)
# ----------------------------------------------------------------------------
@jax.jit
def adni_backbone_forward(params, x1, x1_flag, x2, x2_flag, x3, x3_flag,
                          label, label_flag):
    E = params["w1_cat"].shape[1]

    f1 = (x1_flag != 0).astype(jnp.float32).reshape(-1, 1)
    f2 = (x2_flag != 0).astype(jnp.float32).reshape(-1, 1)
    f3 = (x3_flag != 0).astype(jnp.float32).reshape(-1, 1)
    yflag = (label_flag != 0).astype(jnp.float32).reshape(-1, 1)
    y1h = jax.nn.one_hot(label, NUM_CLASSES, dtype=jnp.float32)

    # Lane-pad raw feature axes and concatenate -> single (B, 1152) input DMA.
    x1p = jnp.pad(x1, ((0, 0), (0, PAD_DIMS[0] - IN_DIMS[0])))
    x2p = jnp.pad(x2, ((0, 0), (0, PAD_DIMS[1] - IN_DIMS[1])))
    x3p = jnp.pad(x3, ((0, 0), (0, PAD_DIMS[2] - IN_DIMS[2])))
    x_cat = jnp.concatenate([x1p, x2p, x3p], axis=1)                 # (B, 1152)

    # Per-column modality flag mask: [f1]*E | [f2]*E | [f3]*E  -> (B, 3E)
    fmask = jnp.repeat(jnp.concatenate([f1, f2, f3], axis=1), E, axis=1)

    args = (
        x_cat, fmask, f1, f2, f3, yflag, y1h,
        params["w0_bd"], params["b0_cat"], params["w1_cat"], params["b1_stack"],
        params["wg"], params["bg"], params["wc"], params["bc"],
    )
    loss = run_fused(args)
    return loss[0, 0]


# ----------------------------------------------------------------------------
if __name__ == "__main__":
    embedding_size = 32
    ffn_layers = 2
    gnn_layers = 2
    batch = 8

    key = jax.random.PRNGKey(0)
    k_par, k1, k2, k3, kf, kl = jax.random.split(key, 6)
    params = make_params(k_par, embedding_size, ffn_layers, gnn_layers)

    x1 = jax.random.normal(k1, (batch, IN_DIMS[0]), jnp.float32)
    x2 = jax.random.normal(k2, (batch, IN_DIMS[1]), jnp.float32)
    x3 = jax.random.normal(k3, (batch, IN_DIMS[2]), jnp.float32)
    kf1, kf2, kf3, kfl = jax.random.split(kf, 4)
    x1_flag = jax.random.bernoulli(kf1, 0.7, (batch,)).astype(jnp.int32)
    x2_flag = jax.random.bernoulli(kf2, 0.7, (batch,)).astype(jnp.int32)
    x3_flag = jax.random.bernoulli(kf3, 0.7, (batch,)).astype(jnp.int32)
    label = jax.random.randint(kl, (batch,), 0, NUM_CLASSES)
    label_flag = jax.random.bernoulli(kfl, 0.9, (batch,)).astype(jnp.int32)

    loss = adni_backbone_forward(params, x1, x1_flag, x2, x2_flag, x3, x3_flag,
                                 label, label_flag)
    jax.block_until_ready(loss)
    assert jnp.isfinite(loss)
    print("KERNEL_OK")
</pallas_src>

<mosaic_0001>
module attributes {stable_mosaic.version = 11 : i64} {
  func.func @fused_adni_kernel(%arg0: memref<8x1152xf32, #tpu.memory_space<vmem>>, %arg1: memref<8x96xf32, #tpu.memory_space<vmem>>, %arg2: memref<8x1xf32, #tpu.memory_space<vmem>>, %arg3: memref<8x1xf32, #tpu.memory_space<vmem>>, %arg4: memref<8x1xf32, #tpu.memory_space<vmem>>, %arg5: memref<8x1xf32, #tpu.memory_space<vmem>>, %arg6: memref<8x3xf32, #tpu.memory_space<vmem>>, %arg7: memref<1152x96xf32, #tpu.memory_space<vmem>>, %arg8: memref<1x96xf32, #tpu.memory_space<vmem>>, %arg9: memref<96x32xf32, #tpu.memory_space<vmem>>, %arg10: memref<3x32xf32, #tpu.memory_space<vmem>>, %arg11: memref<2x32x32xf32, #tpu.memory_space<vmem>>, %arg12: memref<2x1x32xf32, #tpu.memory_space<vmem>>, %arg13: memref<32x3xf32, #tpu.memory_space<vmem>>, %arg14: memref<1x3xf32, #tpu.memory_space<vmem>>, %arg15: memref<1x1xf32, #tpu.memory_space<smem>>) attributes {dimension_semantics = [], scalar_prefetch = 0 : i64, scratch_operands = 0 : i64, tpu.core_type = #tpu.core_type<tc>} {
    %c0 = arith.constant 0 : index
    %c0_0 = arith.constant 0 : index
    %0 = vector.load %arg0[%c0, %c0_0] : memref<8x1152xf32, #tpu.memory_space<vmem>>, vector<8x1152xf32>
    %c0_1 = arith.constant 0 : index
    %c0_2 = arith.constant 0 : index
    %1 = vector.load %arg7[%c0_1, %c0_2] : memref<1152x96xf32, #tpu.memory_space<vmem>>, vector<1152x96xf32>
    %cst = arith.constant dense<0.000000e+00> : vector<8x96xf32>
    %2 = tpu.matmul %0, %1, %cst {dimension_numbers = #tpu.dot_dimension_numbers<[1], [0], [0], [1], [0, 0, 1, 1], [], []>} : vector<8x1152xf32>, vector<1152x96xf32>, vector<8x96xf32> -> vector<8x96xf32>
    %c0_3 = arith.constant 0 : index
    %c0_4 = arith.constant 0 : index
    %3 = vector.load %arg8[%c0_3, %c0_4] : memref<1x96xf32, #tpu.memory_space<vmem>>, vector<1x96xf32>
    %4 = vector.broadcast %3 : vector<1x96xf32> to vector<8x96xf32>
    %5 = arith.addf %2, %4 : vector<8x96xf32>
    %cst_5 = arith.constant 0.000000e+00 : f32
    %6 = vector.broadcast %cst_5 : f32 to vector<8x96xf32>
    %7 = arith.maximumf %5, %6 : vector<8x96xf32>
    %c0_6 = arith.constant 0 : index
    %c0_7 = arith.constant 0 : index
    %8 = vector.load %arg1[%c0_6, %c0_7] : memref<8x96xf32, #tpu.memory_space<vmem>>, vector<8x96xf32>
    %9 = arith.mulf %7, %8 : vector<8x96xf32>
    %c0_8 = arith.constant 0 : index
    %c0_9 = arith.constant 0 : index
    %10 = vector.load %arg9[%c0_8, %c0_9] : memref<96x32xf32, #tpu.memory_space<vmem>>, vector<96x32xf32>
    %cst_10 = arith.constant dense<0.000000e+00> : vector<8x32xf32>
    %11 = tpu.matmul %9, %10, %cst_10 {dimension_numbers = #tpu.dot_dimension_numbers<[1], [0], [0], [1], [0, 0, 1, 1], [], []>} : vector<8x96xf32>, vector<96x32xf32>, vector<8x32xf32> -> vector<8x32xf32>
    %c0_11 = arith.constant 0 : index
    %c0_12 = arith.constant 0 : index
    %12 = vector.load %arg2[%c0_11, %c0_12] : memref<8x1xf32, #tpu.memory_space<vmem>>, vector<8x1xf32>
    %c0_13 = arith.constant 0 : index
    %c0_14 = arith.constant 0 : index
    %13 = vector.load %arg3[%c0_13, %c0_14] : memref<8x1xf32, #tpu.memory_space<vmem>>, vector<8x1xf32>
    %c0_15 = arith.constant 0 : index
    %c0_16 = arith.constant 0 : index
    %14 = vector.load %arg4[%c0_15, %c0_16] : memref<8x1xf32, #tpu.memory_space<vmem>>, vector<8x1xf32>
    %c0_17 = arith.constant 0 : index
    %c0_18 = arith.constant 0 : index
    %15 = vector.load %arg10[%c0_17, %c0_18] : memref<3x32xf32, #tpu.memory_space<vmem>>, vector<1x32xf32>
    %16 = vector.broadcast %12 : vector<8x1xf32> to vector<8x32xf32>
    %17 = vector.broadcast %15 : vector<1x32xf32> to vector<8x32xf32>
    %18 = arith.mulf %16, %17 : vector<8x32xf32>
    %19 = arith.addf %11, %18 : vector<8x32xf32>
    %c1 = arith.constant 1 : index
    %c0_19 = arith.constant 0 : index
    %20 = vector.load %arg10[%c1, %c0_19] : memref<3x32xf32, #tpu.memory_space<vmem>>, vector<1x32xf32>
    %21 = vector.broadcast %13 : vector<8x1xf32> to vector<8x32xf32>
    %22 = vector.broadcast %20 : vector<1x32xf32> to vector<8x32xf32>
    %23 = arith.mulf %21, %22 : vector<8x32xf32>
    %24 = arith.addf %19, %23 : vector<8x32xf32>
    %c2 = arith.constant 2 : index
    %c0_20 = arith.constant 0 : index
    %25 = vector.load %arg10[%c2, %c0_20] : memref<3x32xf32, #tpu.memory_space<vmem>>, vector<1x32xf32>
    %26 = vector.broadcast %14 : vector<8x1xf32> to vector<8x32xf32>
    %27 = vector.broadcast %25 : vector<1x32xf32> to vector<8x32xf32>
    %28 = arith.mulf %26, %27 : vector<8x32xf32>
    %29 = arith.addf %24, %28 : vector<8x32xf32>
    %30 = arith.addf %12, %13 : vector<8x1xf32>
    %31 = arith.addf %30, %14 : vector<8x1xf32>
    %cst_21 = arith.constant 1.000000e+00 : f32
    %32 = vector.broadcast %cst_21 : f32 to vector<8x1xf32>
    %33 = arith.maximumf %31, %32 : vector<8x1xf32>
    %34 = vector.broadcast %33 : vector<8x1xf32> to vector<8x32xf32>
    %35 = arith.divf %29, %34 : vector<8x32xf32>
    %c0_22 = arith.constant 0 : index
    %c0_23 = arith.constant 0 : index
    %c0_24 = arith.constant 0 : index
    %36 = vector.load %arg11[%c0_22, %c0_23, %c0_24] : memref<2x32x32xf32, #tpu.memory_space<vmem>>, vector<1x32x32xf32>
    %37 = vector.shape_cast %36 : vector<1x32x32xf32> to vector<32x32xf32>
    %cst_25 = arith.constant dense<0.000000e+00> : vector<8x32xf32>
    %38 = tpu.matmul %35, %37, %cst_25 {dimension_numbers = #tpu.dot_dimension_numbers<[1], [0], [0], [1], [0, 0, 1, 1], [], []>} : vector<8x32xf32>, vector<32x32xf32>, vector<8x32xf32> -> vector<8x32xf32>
    %c0_26 = arith.constant 0 : index
    %c0_27 = arith.constant 0 : index
    %c0_28 = arith.constant 0 : index
    %39 = vector.load %arg12[%c0_26, %c0_27, %c0_28] : memref<2x1x32xf32, #tpu.memory_space<vmem>>, vector<1x1x32xf32>
    %40 = vector.shape_cast %39 : vector<1x1x32xf32> to vector<1x32xf32>
    %41 = vector.broadcast %40 : vector<1x32xf32> to vector<8x32xf32>
    %42 = arith.addf %38, %41 : vector<8x32xf32>
    %cst_29 = arith.constant 0.000000e+00 : f32
    %43 = vector.broadcast %cst_29 : f32 to vector<8x32xf32>
    %44 = arith.maximumf %42, %43 : vector<8x32xf32>
    %c1_30 = arith.constant 1 : index
    %c0_31 = arith.constant 0 : index
    %c0_32 = arith.constant 0 : index
    %45 = vector.load %arg11[%c1_30, %c0_31, %c0_32] : memref<2x32x32xf32, #tpu.memory_space<vmem>>, vector<1x32x32xf32>
    %46 = vector.shape_cast %45 : vector<1x32x32xf32> to vector<32x32xf32>
    %cst_33 = arith.constant dense<0.000000e+00> : vector<8x32xf32>
    %47 = tpu.matmul %44, %46, %cst_33 {dimension_numbers = #tpu.dot_dimension_numbers<[1], [0], [0], [1], [0, 0, 1, 1], [], []>} : vector<8x32xf32>, vector<32x32xf32>, vector<8x32xf32> -> vector<8x32xf32>
    %c1_34 = arith.constant 1 : index
    %c0_35 = arith.constant 0 : index
    %c0_36 = arith.constant 0 : index
    %48 = vector.load %arg12[%c1_34, %c0_35, %c0_36] : memref<2x1x32xf32, #tpu.memory_space<vmem>>, vector<1x1x32xf32>
    %49 = vector.shape_cast %48 : vector<1x1x32xf32> to vector<1x32xf32>
    %50 = vector.broadcast %49 : vector<1x32xf32> to vector<8x32xf32>
    %51 = arith.addf %47, %50 : vector<8x32xf32>
    %cst_37 = arith.constant 0.000000e+00 : f32
    %52 = vector.broadcast %cst_37 : f32 to vector<8x32xf32>
    %53 = arith.maximumf %51, %52 : vector<8x32xf32>
    %c0_38 = arith.constant 0 : index
    %c0_39 = arith.constant 0 : index
    %54 = vector.load %arg13[%c0_38, %c0_39] : memref<32x3xf32, #tpu.memory_space<vmem>>, vector<32x3xf32>
    %cst_40 = arith.constant dense<0.000000e+00> : vector<8x3xf32>
    %55 = tpu.matmul %53, %54, %cst_40 {dimension_numbers = #tpu.dot_dimension_numbers<[1], [0], [0], [1], [0, 0, 1, 1], [], []>} : vector<8x32xf32>, vector<32x3xf32>, vector<8x3xf32> -> vector<8x3xf32>
    %c0_41 = arith.constant 0 : index
    %c0_42 = arith.constant 0 : index
    %56 = vector.load %arg14[%c0_41, %c0_42] : memref<1x3xf32, #tpu.memory_space<vmem>>, vector<1x3xf32>
    %57 = vector.broadcast %56 : vector<1x3xf32> to vector<8x3xf32>
    %58 = arith.addf %55, %57 : vector<8x3xf32>
    %cst_43 = arith.constant dense<0xFF800000> : vector<8xf32>
    %59 = vector.multi_reduction <maximumf>, %58, %cst_43 [1] : vector<8x3xf32> to vector<8xf32>
    %60 = vector.shape_cast %59 : vector<8xf32> to vector<8x1xf32>
    %61 = vector.broadcast %60 : vector<8x1xf32> to vector<8x3xf32>
    %62 = arith.subf %58, %61 : vector<8x3xf32>
    %63 = math.exp %62 : vector<8x3xf32>
    %cst_44 = arith.constant dense<0.000000e+00> : vector<8xf32>
    %64 = vector.multi_reduction <add>, %63, %cst_44 [1] : vector<8x3xf32> to vector<8xf32>
    %65 = vector.shape_cast %64 : vector<8xf32> to vector<8x1xf32>
    %66 = math.log %65 : vector<8x1xf32>
    %67 = arith.addf %60, %66 : vector<8x1xf32>
    %c0_45 = arith.constant 0 : index
    %c0_46 = arith.constant 0 : index
    %68 = vector.load %arg6[%c0_45, %c0_46] : memref<8x3xf32, #tpu.memory_space<vmem>>, vector<8x3xf32>
    %69 = arith.mulf %68, %58 : vector<8x3xf32>
    %cst_47 = arith.constant dense<0.000000e+00> : vector<8xf32>
    %70 = vector.multi_reduction <add>, %69, %cst_47 [1] : vector<8x3xf32> to vector<8xf32>
    %71 = vector.shape_cast %70 : vector<8xf32> to vector<8x1xf32>
    %c0_48 = arith.constant 0 : index
    %c0_49 = arith.constant 0 : index
    %72 = vector.load %arg5[%c0_48, %c0_49] : memref<8x1xf32, #tpu.memory_space<vmem>>, vector<8x1xf32>
    %73 = arith.subf %67, %71 : vector<8x1xf32>
    %74 = arith.mulf %73, %72 : vector<8x1xf32>
    %75 = vector.shape_cast %72 : vector<8x1xf32> to vector<1x8x1xf32>
    %cst_50 = arith.constant dense<0.000000e+00> : vector<1xf32>
    %76 = vector.multi_reduction <add>, %75, %cst_50 [1, 2] : vector<1x8x1xf32> to vector<1xf32>
    %77 = vector.shape_cast %76 : vector<1xf32> to vector<1x1x1xf32>
    %78 = vector.extract %77[0, 0, 0] : f32 from vector<1x1x1xf32>
    %cst_51 = arith.constant 1.000000e+00 : f32
    %79 = arith.maximumf %78, %cst_51 : f32
    %80 = vector.shape_cast %74 : vector<8x1xf32> to vector<1x8x1xf32>
    %cst_52 = arith.constant dense<0.000000e+00> : vector<1xf32>
    %81 = vector.multi_reduction <add>, %80, %cst_52 [1, 2] : vector<1x8x1xf32> to vector<1xf32>
    %82 = vector.shape_cast %81 : vector<1xf32> to vector<1x1x1xf32>
    %83 = vector.extract %82[0, 0, 0] : f32 from vector<1x1x1xf32>
    %84 = arith.divf %83, %79 : f32
    %c0_53 = arith.constant 0 : index
    %c0_54 = arith.constant 0 : index
    %85 = memref.load %arg15[%c0_53, %c0_54] : memref<1x1xf32, #tpu.memory_space<smem>>
    memref.store %84, %arg15[%c0_53, %c0_54] : memref<1x1xf32, #tpu.memory_space<smem>>
    return
  }
}

</mosaic_0001>

<llo_original>
// kernel: adni_backbone_forward.1
$region0: #{adni_backbone_forward.1}
  #allocation0 [shape = 'u32[]', space=smem, size = 0x4, offset = 0x4, fixed_abs, tag = 'smem constant byte address 0x4 - core index']
  #allocation1 [shape = 'u32[144,128]{1,0:T(1,128)}', space=vmem, size = 0x12000, scoped, tag = 'internal scratch']
  %s0 = inlined_call_operand.vmem [shape: f32[8,1152], index: 0, kind: input, shape index: {}]
  %s1 = inlined_call_operand.vmem [shape: f32[8,96], index: 1, kind: input, shape index: {}]
  %s2 = inlined_call_operand.vmem [shape: f32[8,1], index: 2, kind: input, shape index: {}]
  %s3 = inlined_call_operand.vmem [shape: f32[8,1], index: 3, kind: input, shape index: {}]
  %s4 = inlined_call_operand.vmem [shape: f32[8,1], index: 4, kind: input, shape index: {}]
  %s5 = inlined_call_operand.vmem [shape: f32[8,1], index: 5, kind: input, shape index: {}]
  %s6 = inlined_call_operand.vmem [shape: f32[8,3], index: 6, kind: input, shape index: {}]
  %s7 = inlined_call_operand.vmem [shape: f32[1152,96], index: 7, kind: input, shape index: {}]
  %s8 = inlined_call_operand.vmem [shape: f32[1,96], index: 8, kind: input, shape index: {}]
  %s9 = inlined_call_operand.vmem [shape: f32[96,32], index: 9, kind: input, shape index: {}]
  %s10 = inlined_call_operand.vmem [shape: f32[3,32], index: 10, kind: input, shape index: {}]
  %s11 = inlined_call_operand.vmem [shape: f32[2,32,32], index: 11, kind: input, shape index: {}]
  %s12 = inlined_call_operand.vmem [shape: f32[2,1,32], index: 12, kind: input, shape index: {}]
  %s13 = inlined_call_operand.vmem [shape: f32[32,3], index: 13, kind: input, shape index: {}]
  %s14 = inlined_call_operand.vmem [shape: f32[1,3], index: 14, kind: input, shape index: {}]
  %s15 = inlined_call_operand.hbm [shape: f32[1,1], index: 15, kind: output, shape index: {}]
  %s16 = sld [smem:[#allocation0]]
  $region70: #{adni_backbone_forward.1} parent=0
    _
  %s18 = ssub.s32 1, %s16
  %s19 = scalar_select 0, %s18, %s16
  $region1: #{adni_backbone_forward.1} parent=0
    #allocation2 [shape = 'u8[512]{0}', space=smem, size = 0x200, scoped, tag = 'output window, operand 0, single buffered']
    #allocation3 [shape = 's32[1]{0}', space=sflag, size = 0x4, scoped, tag = 'scoped memory for adni_backbone_forward.1']
    %20 = vsyncpa [#allocation3], 0
    // Predicated region
    $region2: #{adni_backbone_forward.1} parent=1 // pred_check
      _
    $region3: #{adni_backbone_forward.1} parent=1 // pred_check_branch
      %22 = sbr.rel (0) target = $region5
    $region4: #{adni_backbone_forward.1} parent=1 // pred_region
      _
    $region5: #{adni_backbone_forward.1} parent=1 // pred_fallthru
      _
    // Predicated region
    $region6: #{adni_backbone_forward.1} parent=1 // pred_check
      _
    $region7: #{adni_backbone_forward.1} parent=1 // pred_check_branch
      %24 = sbr.rel (0) target = $region9
    $region8: #{adni_backbone_forward.1} parent=1 // pred_region
      _
    $region9: #{adni_backbone_forward.1} parent=1 // pred_fallthru
      _
    // Predicated region
    $region10: #{adni_backbone_forward.1} parent=1 // pred_check
      _
    $region11: #{adni_backbone_forward.1} parent=1 // pred_check_branch
      %26 = sbr.rel (0) target = $region13
    $region12: #{adni_backbone_forward.1} parent=1 // pred_region
      _
    $region13: #{adni_backbone_forward.1} parent=1 // pred_fallthru
      _
    // Predicated region
    $region14: #{adni_backbone_forward.1} parent=1 // pred_check
      _
    $region15: #{adni_backbone_forward.1} parent=1 // pred_check_branch
      %28 = sbr.rel (0) target = $region17
    $region16: #{adni_backbone_forward.1} parent=1 // pred_region
      _
    $region17: #{adni_backbone_forward.1} parent=1 // pred_fallthru
      _
    // Predicated region
    $region18: #{adni_backbone_forward.1} parent=1 // pred_check
      _
    $region19: #{adni_backbone_forward.1} parent=1 // pred_check_branch
      %30 = sbr.rel (0) target = $region21
    $region20: #{adni_backbone_forward.1} parent=1 // pred_region
      _
    $region21: #{adni_backbone_forward.1} parent=1 // pred_fallthru
      _
    // Predicated region
    $region22: #{adni_backbone_forward.1} parent=1 // pred_check
      _
    $region23: #{adni_backbone_forward.1} parent=1 // pred_check_branch
      %32 = sbr.rel (0) target = $region25
    $region24: #{adni_backbone_forward.1} parent=1 // pred_region
      _
    $region25: #{adni_backbone_forward.1} parent=1 // pred_fallthru
      _
    // Predicated region
    $region26: #{adni_backbone_forward.1} parent=1 // pred_check
      _
    $region27: #{adni_backbone_forward.1} parent=1 // pred_check_branch
      %34 = sbr.rel (0) target = $region29
    $region28: #{adni_backbone_forward.1} parent=1 // pred_region
      _
    $region29: #{adni_backbone_forward.1} parent=1 // pred_fallthru
      _
    // Predicated region
    $region30: #{adni_backbone_forward.1} parent=1 // pred_check
      _
    $region31: #{adni_backbone_forward.1} parent=1 // pred_check_branch
      %36 = sbr.rel (0) target = $region33
    $region32: #{adni_backbone_forward.1} parent=1 // pred_region
      _
    $region33: #{adni_backbone_forward.1} parent=1 // pred_fallthru
      _
    // Predicated region
    $region34: #{adni_backbone_forward.1} parent=1 // pred_check
      _
    $region35: #{adni_backbone_forward.1} parent=1 // pred_check_branch
      %38 = sbr.rel (0) target = $region37
    $region36: #{adni_backbone_forward.1} parent=1 // pred_region
      _
    $region37: #{adni_backbone_forward.1} parent=1 // pred_fallthru
      _
    // Predicated region
    $region38: #{adni_backbone_forward.1} parent=1 // pred_check
      _
    $region39: #{adni_backbone_forward.1} parent=1 // pred_check_branch
      %40 = sbr.rel (0) target = $region41
    $region40: #{adni_backbone_forward.1} parent=1 // pred_region
      _
    $region41: #{adni_backbone_forward.1} parent=1 // pred_fallthru
      _
    // Predicated region
    $region42: #{adni_backbone_forward.1} parent=1 // pred_check
      _
    $region43: #{adni_backbone_forward.1} parent=1 // pred_check_branch
      %42 = sbr.rel (0) target = $region45
    $region44: #{adni_backbone_forward.1} parent=1 // pred_region
      _
    $region45: #{adni_backbone_forward.1} parent=1 // pred_fallthru
      _
    // Predicated region
    $region46: #{adni_backbone_forward.1} parent=1 // pred_check
      _
    $region47: #{adni_backbone_forward.1} parent=1 // pred_check_branch
      %44 = sbr.rel (0) target = $region49
    $region48: #{adni_backbone_forward.1} parent=1 // pred_region
      _
    $region49: #{adni_backbone_forward.1} parent=1 // pred_fallthru
      _
    // Predicated region
    $region50: #{adni_backbone_forward.1} parent=1 // pred_check
      _
    $region51: #{adni_backbone_forward.1} parent=1 // pred_check_branch
      %46 = sbr.rel (0) target = $region53
    $region52: #{adni_backbone_forward.1} parent=1 // pred_region
      _
    $region53: #{adni_backbone_forward.1} parent=1 // pred_fallthru
      _
    // Predicated region
    $region54: #{adni_backbone_forward.1} parent=1 // pred_check
      _
    $region55: #{adni_backbone_forward.1} parent=1 // pred_check_branch
      %48 = sbr.rel (0) target = $region57
    $region56: #{adni_backbone_forward.1} parent=1 // pred_region
      _
    $region57: #{adni_backbone_forward.1} parent=1 // pred_fallthru
      _
    // Predicated region
    $region58: #{adni_backbone_forward.1} parent=1 // pred_check
      _
    $region59: #{adni_backbone_forward.1} parent=1 // pred_check_branch
      %50 = sbr.rel (0) target = $region61
    $region60: #{adni_backbone_forward.1} parent=1 // pred_region
      _
    $region61: #{adni_backbone_forward.1} parent=1 // pred_fallthru
      _
    %v51 = vld [vmem:[%s0] sm:$0xff]
    %v52 = vld [vmem:[%s0 + $0x8] sm:$0xff]
    %v53 = vld [vmem:[%s0 + $0x10] sm:$0xff]
    %v54 = vld [vmem:[%s0 + $0x18] sm:$0xff]
    %v55 = vld [vmem:[%s0 + $0x20] sm:$0xff]
    %v56 = vld [vmem:[%s0 + $0x28] sm:$0xff]
    %v57 = vld [vmem:[%s0 + $0x30] sm:$0xff]
    %v58 = vld [vmem:[%s0 + $0x38] sm:$0xff]
    %v59 = vld [vmem:[%s0 + $0x40] sm:$0xff]
    %v60 = vld [vmem:[%s7] sm:$0xff]
    %v61 = vld [vmem:[%s7 + $0x8] sm:$0xff]
    %v62 = vld [vmem:[%s7 + $0x10] sm:$0xff]
    %v63 = vld [vmem:[%s7 + $0x18] sm:$0xff]
    %v64 = vld [vmem:[%s7 + $0x20] sm:$0xff]
    %v65 = vld [vmem:[%s7 + $0x28] sm:$0xff]
    %v66 = vld [vmem:[%s7 + $0x30] sm:$0xff]
    %v67 = vld [vmem:[%s7 + $0x38] sm:$0xff]
    %v68 = vld [vmem:[%s7 + $0x40] sm:$0xff]
    %v69 = vld [vmem:[%s7 + $0x48] sm:$0xff]
    %v70 = vld [vmem:[%s7 + $0x50] sm:$0xff]
    %v71 = vld [vmem:[%s7 + $0x58] sm:$0xff]
    %v72 = vld [vmem:[%s7 + $0x60] sm:$0xff]
    %v73 = vld [vmem:[%s7 + $0x68] sm:$0xff]
    %v74 = vld [vmem:[%s7 + $0x70] sm:$0xff]
    %v75 = vld [vmem:[%s7 + $0x78] sm:$0xff]
    %v76 = vld [vmem:[%s7 + $0x80] sm:$0xff]
    %v77 = vld [vmem:[%s7 + $0x88] sm:$0xff]
    %v78 = vld [vmem:[%s7 + $0x90] sm:$0xff]
    %v79 = vld [vmem:[%s7 + $0x98] sm:$0xff]
    %v80 = vld [vmem:[%s7 + $0xa0] sm:$0xff]
    %v81 = vld [vmem:[%s7 + $0xa8] sm:$0xff]
    %v82 = vld [vmem:[%s7 + $0xb0] sm:$0xff]
    %v83 = vld [vmem:[%s7 + $0xb8] sm:$0xff]
    %v84 = vld [vmem:[%s7 + $0xc0] sm:$0xff]
    %v85 = vld [vmem:[%s7 + $0xc8] sm:$0xff]
    %v86 = vld [vmem:[%s7 + $0xd0] sm:$0xff]
    %v87 = vld [vmem:[%s7 + $0xd8] sm:$0xff]
    %v88 = vld [vmem:[%s7 + $0xe0] sm:$0xff]
    %v89 = vld [vmem:[%s7 + $0xe8] sm:$0xff]
    %v90 = vld [vmem:[%s7 + $0xf0] sm:$0xff]
    %v91 = vld [vmem:[%s7 + $0xf8] sm:$0xff]
    %v92 = vld [vmem:[%s7 + $0x100] sm:$0xff]
    %v93 = vld [vmem:[%s7 + $0x108] sm:$0xff]
    %v94 = vld [vmem:[%s7 + $0x110] sm:$0xff]
    %v95 = vld [vmem:[%s7 + $0x118] sm:$0xff]
    %v96 = vld [vmem:[%s7 + $0x120] sm:$0xff]
    %v97 = vld [vmem:[%s7 + $0x128] sm:$0xff]
    %v98 = vld [vmem:[%s7 + $0x130] sm:$0xff]
    %v99 = vld [vmem:[%s7 + $0x138] sm:$0xff]
    %v100 = vld [vmem:[%s7 + $0x140] sm:$0xff]
    %v101 = vld [vmem:[%s7 + $0x148] sm:$0xff]
    %v102 = vld [vmem:[%s7 + $0x150] sm:$0xff]
    %v103 = vld [vmem:[%s7 + $0x158] sm:$0xff]
    %v104 = vld [vmem:[%s7 + $0x160] sm:$0xff]
    %v105 = vld [vmem:[%s7 + $0x168] sm:$0xff]
    %v106 = vld [vmem:[%s7 + $0x170] sm:$0xff]
    %v107 = vld [vmem:[%s7 + $0x178] sm:$0xff]
    %v108 = vld [vmem:[%s7 + $0x180] sm:$0xff]
    %v109 = vld [vmem:[%s7 + $0x188] sm:$0xff]
    %v110 = vld [vmem:[%s7 + $0x190] sm:$0xff]
    %v111 = vld [vmem:[%s7 + $0x198] sm:$0xff]
    %v112 = vld [vmem:[%s7 + $0x1a0] sm:$0xff]
    %v113 = vld [vmem:[%s7 + $0x1a8] sm:$0xff]
    %v114 = vld [vmem:[%s7 + $0x1b0] sm:$0xff]
    %v115 = vld [vmem:[%s7 + $0x1b8] sm:$0xff]
    %v116 = vld [vmem:[%s7 + $0x1c0] sm:$0xff]
    %v117 = vld [vmem:[%s7 + $0x1c8] sm:$0xff]
    %v118 = vld [vmem:[%s7 + $0x1d0] sm:$0xff]
    %v119 = vld [vmem:[%s7 + $0x1d8] sm:$0xff]
    %v120 = vld [vmem:[%s7 + $0x1e0] sm:$0xff]
    %v121 = vld [vmem:[%s7 + $0x1e8] sm:$0xff]
    %v122 = vld [vmem:[%s7 + $0x1f0] sm:$0xff]
    %v123 = vld [vmem:[%s7 + $0x1f8] sm:$0xff]
    %v124 = vld [vmem:[%s7 + $0x200] sm:$0xff]
    %v125 = vld [vmem:[%s7 + $0x208] sm:$0xff]
    %v126 = vld [vmem:[%s7 + $0x210] sm:$0xff]
    %v127 = vld [vmem:[%s7 + $0x218] sm:$0xff]
    %v128 = vld [vmem:[%s7 + $0x220] sm:$0xff]
    %v129 = vld [vmem:[%s7 + $0x228] sm:$0xff]
    %v130 = vld [vmem:[%s7 + $0x230] sm:$0xff]
    %v131 = vld [vmem:[%s7 + $0x238] sm:$0xff]
    %v132 = vld [vmem:[%s7 + $0x240] sm:$0xff]
    %v133 = vld [vmem:[%s7 + $0x248] sm:$0xff]
    %v134 = vld [vmem:[%s7 + $0x250] sm:$0xff]
    %v135 = vld [vmem:[%s7 + $0x258] sm:$0xff]
    %v136 = vld [vmem:[%s7 + $0x260] sm:$0xff]
    %v137 = vld [vmem:[%s7 + $0x268] sm:$0xff]
    %v138 = vld [vmem:[%s7 + $0x270] sm:$0xff]
    %v139 = vld [vmem:[%s7 + $0x278] sm:$0xff]
    %v140 = vld [vmem:[%s7 + $0x280] sm:$0xff]
    %v141 = vld [vmem:[%s7 + $0x288] sm:$0xff]
    %v142 = vld [vmem:[%s7 + $0x290] sm:$0xff]
    %v143 = vld [vmem:[%s7 + $0x298] sm:$0xff]
    %v144 = vld [vmem:[%s7 + $0x2a0] sm:$0xff]
    %v145 = vld [vmem:[%s7 + $0x2a8] sm:$0xff]
    %v146 = vld [vmem:[%s7 + $0x2b0] sm:$0xff]
    %v147 = vld [vmem:[%s7 + $0x2b8] sm:$0xff]
    %v148 = vld [vmem:[%s7 + $0x2c0] sm:$0xff]
    %v149 = vld [vmem:[%s7 + $0x2c8] sm:$0xff]
    %v150 = vld [vmem:[%s7 + $0x2d0] sm:$0xff]
    %v151 = vld [vmem:[%s7 + $0x2d8] sm:$0xff]
    %v152 = vld [vmem:[%s7 + $0x2e0] sm:$0xff]
    %v153 = vld [vmem:[%s7 + $0x2e8] sm:$0xff]
    %v154 = vld [vmem:[%s7 + $0x2f0] sm:$0xff]
    %v155 = vld [vmem:[%s7 + $0x2f8] sm:$0xff]
    %v156 = vld [vmem:[%s7 + $0x300] sm:$0xff]
    %v157 = vld [vmem:[%s7 + $0x308] sm:$0xff]
    %v158 = vld [vmem:[%s7 + $0x310] sm:$0xff]
    %v159 = vld [vmem:[%s7 + $0x318] sm:$0xff]
    %v160 = vld [vmem:[%s7 + $0x320] sm:$0xff]
    %v161 = vld [vmem:[%s7 + $0x328] sm:$0xff]
    %v162 = vld [vmem:[%s7 + $0x330] sm:$0xff]
    %v163 = vld [vmem:[%s7 + $0x338] sm:$0xff]
    %v164 = vld [vmem:[%s7 + $0x340] sm:$0xff]
    %v165 = vld [vmem:[%s7 + $0x348] sm:$0xff]
    %v166 = vld [vmem:[%s7 + $0x350] sm:$0xff]
    %v167 = vld [vmem:[%s7 + $0x358] sm:$0xff]
    %v168 = vld [vmem:[%s7 + $0x360] sm:$0xff]
    %v169 = vld [vmem:[%s7 + $0x368] sm:$0xff]
    %v170 = vld [vmem:[%s7 + $0x370] sm:$0xff]
    %v171 = vld [vmem:[%s7 + $0x378] sm:$0xff]
    %v172 = vld [vmem:[%s7 + $0x380] sm:$0xff]
    %v173 = vld [vmem:[%s7 + $0x388] sm:$0xff]
    %v174 = vld [vmem:[%s7 + $0x390] sm:$0xff]
    %v175 = vld [vmem:[%s7 + $0x398] sm:$0xff]
    %v176 = vld [vmem:[%s7 + $0x3a0] sm:$0xff]
    %v177 = vld [vmem:[%s7 + $0x3a8] sm:$0xff]
    %v178 = vld [vmem:[%s7 + $0x3b0] sm:$0xff]
    %v179 = vld [vmem:[%s7 + $0x3b8] sm:$0xff]
    %v180 = vld [vmem:[%s7 + $0x3c0] sm:$0xff]
    %v181 = vld [vmem:[%s7 + $0x3c8] sm:$0xff]
    %v182 = vld [vmem:[%s7 + $0x3d0] sm:$0xff]
    %v183 = vld [vmem:[%s7 + $0x3d8] sm:$0xff]
    %v184 = vld [vmem:[%s7 + $0x3e0] sm:$0xff]
    %v185 = vld [vmem:[%s7 + $0x3e8] sm:$0xff]
    %v186 = vld [vmem:[%s7 + $0x3f0] sm:$0xff]
    %v187 = vld [vmem:[%s7 + $0x3f8] sm:$0xff]
    %v188 = vld [vmem:[%s7 + $0x400] sm:$0xff]
    %v189 = vld [vmem:[%s7 + $0x408] sm:$0xff]
    %v190 = vld [vmem:[%s7 + $0x410] sm:$0xff]
    %v191 = vld [vmem:[%s7 + $0x418] sm:$0xff]
    %v192 = vld [vmem:[%s7 + $0x420] sm:$0xff]
    %v193 = vld [vmem:[%s7 + $0x428] sm:$0xff]
    %v194 = vld [vmem:[%s7 + $0x430] sm:$0xff]
    %v195 = vld [vmem:[%s7 + $0x438] sm:$0xff]
    %v196 = vld [vmem:[%s7 + $0x440] sm:$0xff]
    %v197 = vld [vmem:[%s7 + $0x448] sm:$0xff]
    %v198 = vld [vmem:[%s7 + $0x450] sm:$0xff]
    %v199 = vld [vmem:[%s7 + $0x458] sm:$0xff]
    %v200 = vld [vmem:[%s7 + $0x460] sm:$0xff]
    %v201 = vld [vmem:[%s7 + $0x468] sm:$0xff]
    %v202 = vld [vmem:[%s7 + $0x470] sm:$0xff]
    %v203 = vld [vmem:[%s7 + $0x478] sm:$0xff]
    %v204 = vld [vmem:[%s8] sm:$0x1]
    %v206 = vlaneseq
    %v207 = vshrl.u32 %v206, 7
    %v208 = vsub.s32 0, %v207
    %v209 = vrot.slane %v204, %v208
    %211 = vmatprep.subr.mxu0 0.0
    %212 = vmatpush1.msra.mxu0 %v60
    %213 = vmatprep.subr.mxu0 0.0
    %214 = vmatpush1.msra.mxu0 %v61
    %215 = vmatprep.subr.mxu0 0.0
    %216 = vmatpush1.msra.mxu0 %v62
    %217 = vmatprep.subr.mxu0 0.0
    %218 = vmatpush1.msra.mxu0 %v63
    %219 = vmatprep.subr.mxu0 0.0
    %220 = vmatpush1.msra.mxu0 %v64
    %221 = vmatprep.subr.mxu0 0.0
    %222 = vmatpush1.msra.mxu0 %v65
    %223 = vmatprep.subr.mxu0 0.0
    %224 = vmatpush1.msra.mxu0 %v66
    %225 = vmatprep.subr.mxu0 0.0
    %226 = vmatpush1.msra.mxu0 %v67
    %227 = vmatprep.subr.mxu0 0.0
    %228 = vmatpush1.msra.mxu0 %v68
    %229 = vmatprep.subr.mxu0 0.0
    %230 = vmatpush1.msra.mxu0 %v69
    %231 = vmatprep.subr.mxu0 0.0
    %232 = vmatpush1.msra.mxu0 %v70
    %233 = vmatprep.subr.mxu0 0.0
    %234 = vmatpush1.msra.mxu0 %v71
    %235 = vmatprep.subr.mxu0 0.0
    %236 = vmatpush1.msra.mxu0 %v72
    %237 = vmatprep.subr.mxu0 0.0
    %238 = vmatpush1.msra.mxu0 %v73
    %239 = vmatprep.subr.mxu0 0.0
    %240 = vmatpush1.msra.mxu0 %v74
    %241 = vmatprep.subr.mxu0 0.0
    %242 = vmatpush1.msra.mxu0 %v75
    %243 = vmatprep.subr.mxu0 0.0
    %244 = vmatpush1.msra.mxu0 %v76
    %245 = vmatprep.subr.mxu0 0.0
    %246 = vmatpush1.msra.mxu0 %v77
    %247 = vmatprep.subr.mxu0 0.0
    %248 = vmatpush1.msra.mxu0 %v78
    %249 = vmatprep.subr.mxu0 0.0
    %250 = vmatpush1.msra.mxu0 %v79
    %251 = vmatprep.subr.mxu0 0.0
    %252 = vmatpush1.msra.mxu0 %v80
    %253 = vmatprep.subr.mxu0 0.0
    %254 = vmatpush1.msra.mxu0 %v81
    %255 = vmatprep.subr.mxu0 0.0
    %256 = vmatpush1.msra.mxu0 %v82
    %257 = vmatprep.subr.mxu0 0.0
    %258 = vmatpush1.msra.mxu0 %v83
    %259 = vmatprep.subr.mxu0 0.0
    %260 = vmatpush1.msra.mxu0 %v84
    %261 = vmatprep.subr.mxu0 0.0
    %262 = vmatpush1.msra.mxu0 %v85
    %263 = vmatprep.subr.mxu0 0.0
    %264 = vmatpush1.msra.mxu0 %v86
    %265 = vmatprep.subr.mxu0 0.0
    %266 = vmatpush1.msra.mxu0 %v87
    %267 = vmatprep.subr.mxu0 0.0
    %268 = vmatpush1.msra.mxu0 %v88
    %269 = vmatprep.subr.mxu0 0.0
    %270 = vmatpush1.msra.mxu0 %v89
    %271 = vmatprep.subr.mxu0 0.0
    %272 = vmatpush1.msra.mxu0 %v90
    %273 = vmatprep.subr.mxu0 0.0
    %274 = vmatpush1.msra.mxu0 %v91
    %275 = vmatprep.mubr.f32.mxu0 %v52
    %276 = vmatmul.mubr.f32.gmra.mrb[0].mxu0 %v51
    %v277 = vpop.f32.mrb[0].mxu0
    %v278 = vadd.f32 %v209, %v277
    %v279 = vpop.f32.mrb[0].mxu0
    %280 = vdwg.mxu0
    %281 = vmatprep.subr.mxu0 0.0
    %282 = vmatpush1.msra.mxu0 %v92
    %283 = vmatprep.subr.mxu0 0.0
    %284 = vmatpush1.msra.mxu0 %v93
    %285 = vmatprep.subr.mxu0 0.0
    %286 = vmatpush1.msra.mxu0 %v94
    %287 = vmatprep.subr.mxu0 0.0
    %288 = vmatpush1.msra.mxu0 %v95
    %289 = vmatprep.subr.mxu0 0.0
    %290 = vmatpush1.msra.mxu0 %v96
    %291 = vmatprep.subr.mxu0 0.0
    %292 = vmatpush1.msra.mxu0 %v97
    %293 = vmatprep.subr.mxu0 0.0
    %294 = vmatpush1.msra.mxu0 %v98
    %295 = vmatprep.subr.mxu0 0.0
    %296 = vmatpush1.msra.mxu0 %v99
    %297 = vmatprep.subr.mxu0 0.0
    %298 = vmatpush1.msra.mxu0 %v100
    %299 = vmatprep.subr.mxu0 0.0
    %300 = vmatpush1.msra.mxu0 %v101
    %301 = vmatprep.subr.mxu0 0.0
    %302 = vmatpush1.msra.mxu0 %v102
    %303 = vmatprep.subr.mxu0 0.0
    %304 = vmatpush1.msra.mxu0 %v103
    %305 = vmatprep.subr.mxu0 0.0
    %306 = vmatpush1.msra.mxu0 %v104
    %307 = vmatprep.subr.mxu0 0.0
    %308 = vmatpush1.msra.mxu0 %v105
    %309 = vmatprep.subr.mxu0 0.0
    %310 = vmatpush1.msra.mxu0 %v106
    %311 = vmatprep.subr.mxu0 0.0
    %312 = vmatpush1.msra.mxu0 %v107
    %313 = vmatprep.subr.mxu0 0.0
    %314 = vmatpush1.msra.mxu0 %v108
    %315 = vmatprep.subr.mxu0 0.0
    %316 = vmatpush1.msra.mxu0 %v109
    %317 = vmatprep.subr.mxu0 0.0
    %318 = vmatpush1.msra.mxu0 %v110
    %319 = vmatprep.subr.mxu0 0.0
    %320 = vmatpush1.msra.mxu0 %v111
    %321 = vmatprep.subr.mxu0 0.0
    %322 = vmatpush1.msra.mxu0 %v112
    %323 = vmatprep.subr.mxu0 0.0
    %324 = vmatpush1.msra.mxu0 %v113
    %325 = vmatprep.subr.mxu0 0.0
    %326 = vmatpush1.msra.mxu0 %v114
    %327 = vmatprep.subr.mxu0 0.0
    %328 = vmatpush1.msra.mxu0 %v115
    %329 = vmatprep.subr.mxu0 0.0
    %330 = vmatpush1.msra.mxu0 %v116
    %331 = vmatprep.subr.mxu0 0.0
    %332 = vmatpush1.msra.mxu0 %v117
    %333 = vmatprep.subr.mxu0 0.0
    %334 = vmatpush1.msra.mxu0 %v118
    %335 = vmatprep.subr.mxu0 0.0
    %336 = vmatpush1.msra.mxu0 %v119
    %337 = vmatprep.subr.mxu0 0.0
    %338 = vmatpush1.msra.mxu0 %v120
    %339 = vmatprep.subr.mxu0 0.0
    %340 = vmatpush1.msra.mxu0 %v121
    %341 = vmatprep.subr.mxu0 0.0
    %342 = vmatpush1.msra.mxu0 %v122
    %343 = vmatprep.subr.mxu0 0.0
    %344 = vmatpush1.msra.mxu0 %v123
    %345 = vmatprep.mubr.f32.mxu0 %v54
    %346 = vmatmul.mubr.f32.gmra.mrb[0].mxu0 %v53
    %v347 = vpop.f32.mrb[0].mxu0
    %v348 = vadd.f32 %v278, %v347
    %v349 = vpop.f32.mrb[0].mxu0
    %350 = vdwg.mxu0
    %351 = vmatprep.subr.mxu0 0.0
    %352 = vmatpush1.msra.mxu0 %v124
    %353 = vmatprep.subr.mxu0 0.0
    %354 = vmatpush1.msra.mxu0 %v125
    %355 = vmatprep.subr.mxu0 0.0
    %356 = vmatpush1.msra.mxu0 %v126
    %357 = vmatprep.subr.mxu0 0.0
    %358 = vmatpush1.msra.mxu0 %v127
    %359 = vmatprep.subr.mxu0 0.0
    %360 = vmatpush1.msra.mxu0 %v128
    %361 = vmatprep.subr.mxu0 0.0
    %362 = vmatpush1.msra.mxu0 %v129
    %363 = vmatprep.subr.mxu0 0.0
    %364 = vmatpush1.msra.mxu0 %v130
    %365 = vmatprep.subr.mxu0 0.0
    %366 = vmatpush1.msra.mxu0 %v131
    %367 = vmatprep.subr.mxu0 0.0
    %368 = vmatpush1.msra.mxu0 %v132
    %369 = vmatprep.subr.mxu0 0.0
    %370 = vmatpush1.msra.mxu0 %v133
    %371 = vmatprep.subr.mxu0 0.0
    %372 = vmatpush1.msra.mxu0 %v134
    %373 = vmatprep.subr.mxu0 0.0
    %374 = vmatpush1.msra.mxu0 %v135
    %375 = vmatprep.subr.mxu0 0.0
    %376 = vmatpush1.msra.mxu0 %v136
    %377 = vmatprep.subr.mxu0 0.0
    %378 = vmatpush1.msra.mxu0 %v137
    %379 = vmatprep.subr.mxu0 0.0
    %380 = vmatpush1.msra.mxu0 %v138
    %381 = vmatprep.subr.mxu0 0.0
    %382 = vmatpush1.msra.mxu0 %v139
    %383 = vmatprep.subr.mxu0 0.0
    %384 = vmatpush1.msra.mxu0 %v140
    %385 = vmatprep.subr.mxu0 0.0
    %386 = vmatpush1.msra.mxu0 %v141
    %387 = vmatprep.subr.mxu0 0.0
    %388 = vmatpush1.msra.mxu0 %v142
    %389 = vmatprep.subr.mxu0 0.0
    %390 = vmatpush1.msra.mxu0 %v143
    %391 = vmatprep.subr.mxu0 0.0
    %392 = vmatpush1.msra.mxu0 %v144
    %393 = vmatprep.subr.mxu0 0.0
    %394 = vmatpush1.msra.mxu0 %v145
    %395 = vmatprep.subr.mxu0 0.0
    %396 = vmatpush1.msra.mxu0 %v146
    %397 = vmatprep.subr.mxu0 0.0
    %398 = vmatpush1.msra.mxu0 %v147
    %399 = vmatprep.subr.mxu0 0.0
    %400 = vmatpush1.msra.mxu0 %v148
    %401 = vmatprep.subr.mxu0 0.0
    %402 = vmatpush1.msra.mxu0 %v149
    %403 = vmatprep.subr.mxu0 0.0
    %404 = vmatpush1.msra.mxu0 %v150
    %405 = vmatprep.subr.mxu0 0.0
    %406 = vmatpush1.msra.mxu0 %v151
    %407 = vmatprep.subr.mxu0 0.0
    %408 = vmatpush1.msra.mxu0 %v152
    %409 = vmatprep.subr.mxu0 0.0
    %410 = vmatpush1.msra.mxu0 %v153
    %411 = vmatprep.subr.mxu0 0.0
    %412 = vmatpush1.msra.mxu0 %v154
    %413 = vmatprep.subr.mxu0 0.0
    %414 = vmatpush1.msra.mxu0 %v155
    %415 = vmatprep.mubr.f32.mxu0 %v56
    %416 = vmatmul.mubr.f32.gmra.mrb[0].mxu0 %v55
    %v417 = vpop.f32.mrb[0].mxu0
    %v418 = vadd.f32 %v348, %v417
    %v419 = vpop.f32.mrb[0].mxu0
    %420 = vdwg.mxu0
    %421 = vmatprep.subr.mxu0 0.0
    %422 = vmatpush1.msra.mxu0 %v156
    %423 = vmatprep.subr.mxu0 0.0
    %424 = vmatpush1.msra.mxu0 %v157
    %425 = vmatprep.subr.mxu0 0.0
    %426 = vmatpush1.msra.mxu0 %v158
    %427 = vmatprep.subr.mxu0 0.0
    %428 = vmatpush1.msra.mxu0 %v159
    %429 = vmatprep.subr.mxu0 0.0
    %430 = vmatpush1.msra.mxu0 %v160
    %431 = vmatprep.subr.mxu0 0.0
    %432 = vmatpush1.msra.mxu0 %v161
    %433 = vmatprep.subr.mxu0 0.0
    %434 = vmatpush1.msra.mxu0 %v162
    %435 = vmatprep.subr.mxu0 0.0
    %436 = vmatpush1.msra.mxu0 %v163
    %437 = vmatprep.subr.mxu0 0.0
    %438 = vmatpush1.msra.mxu0 %v164
    %439 = vmatprep.subr.mxu0 0.0
    %440 = vmatpush1.msra.mxu0 %v165
    %441 = vmatprep.subr.mxu0 0.0
    %442 = vmatpush1.msra.mxu0 %v166
    %443 = vmatprep.subr.mxu0 0.0
    %444 = vmatpush1.msra.mxu0 %v167
    %445 = vmatprep.subr.mxu0 0.0
    %446 = vmatpush1.msra.mxu0 %v168
    %447 = vmatprep.subr.mxu0 0.0
    %448 = vmatpush1.msra.mxu0 %v169
    %449 = vmatprep.subr.mxu0 0.0
    %450 = vmatpush1.msra.mxu0 %v170
    %451 = vmatprep.subr.mxu0 0.0
    %452 = vmatpush1.msra.mxu0 %v171
    %453 = vmatprep.subr.mxu0 0.0
    %454 = vmatpush1.msra.mxu0 %v172
    %455 = vmatprep.subr.mxu0 0.0
    %456 = vmatpush1.msra.mxu0 %v173
    %457 = vmatprep.subr.mxu0 0.0
    %458 = vmatpush1.msra.mxu0 %v174
    %459 = vmatprep.subr.mxu0 0.0
    %460 = vmatpush1.msra.mxu0 %v175
    %461 = vmatprep.subr.mxu0 0.0
    %462 = vmatpush1.msra.mxu0 %v176
    %463 = vmatprep.subr.mxu0 0.0
    %464 = vmatpush1.msra.mxu0 %v177
    %465 = vmatprep.subr.mxu0 0.0
    %466 = vmatpush1.msra.mxu0 %v178
    %467 = vmatprep.subr.mxu0 0.0
    %468 = vmatpush1.msra.mxu0 %v179
    %469 = vmatprep.subr.mxu0 0.0
    %470 = vmatpush1.msra.mxu0 %v180
    %471 = vmatprep.subr.mxu0 0.0
    %472 = vmatpush1.msra.mxu0 %v181
    %473 = vmatprep.subr.mxu0 0.0
    %474 = vmatpush1.msra.mxu0 %v182
    %475 = vmatprep.subr.mxu0 0.0
    %476 = vmatpush1.msra.mxu0 %v183
    %477 = vmatprep.subr.mxu0 0.0
    %478 = vmatpush1.msra.mxu0 %v184
    %479 = vmatprep.subr.mxu0 0.0
    %480 = vmatpush1.msra.mxu0 %v185
    %481 = vmatprep.subr.mxu0 0.0
    %482 = vmatpush1.msra.mxu0 %v186
    %483 = vmatprep.subr.mxu0 0.0
    %484 = vmatpush1.msra.mxu0 %v187
    %485 = vmatprep.mubr.f32.mxu0 %v58
    %486 = vmatmul.mubr.f32.gmra.mrb[0].mxu0 %v57
    %v487 = vpop.f32.mrb[0].mxu0
    %v488 = vadd.f32 %v418, %v487
    %v489 = vpop.f32.mrb[0].mxu0
    %490 = vdwg.mxu0
    %491 = vmatprep.subr.mxu0 0.0
    %492 = vmatpush1.msra.mxu0 %v188
    %493 = vmatprep.subr.mxu0 0.0
    %494 = vmatpush1.msra.mxu0 %v189
    %495 = vmatprep.subr.mxu0 0.0
    %496 = vmatpush1.msra.mxu0 %v190
    %497 = vmatprep.subr.mxu0 0.0
    %498 = vmatpush1.msra.mxu0 %v191
    %499 = vmatprep.subr.mxu0 0.0
    %500 = vmatpush1.msra.mxu0 %v192
    %501 = vmatprep.subr.mxu0 0.0
    %502 = vmatpush1.msra.mxu0 %v193
    %503 = vmatprep.subr.mxu0 0.0
    %504 = vmatpush1.msra.mxu0 %v194
    %505 = vmatprep.subr.mxu0 0.0
    %506 = vmatpush1.msra.mxu0 %v195
    %507 = vmatprep.subr.mxu0 0.0
    %508 = vmatpush1.msra.mxu0 %v196
    %509 = vmatprep.subr.mxu0 0.0
    %510 = vmatpush1.msra.mxu0 %v197
    %511 = vmatprep.subr.mxu0 0.0
    %512 = vmatpush1.msra.mxu0 %v198
    %513 = vmatprep.subr.mxu0 0.0
    %514 = vmatpush1.msra.mxu0 %v199
    %515 = vmatprep.subr.mxu0 0.0
    %516 = vmatpush1.msra.mxu0 %v200
    %517 = vmatprep.subr.mxu0 0.0
    %518 = vmatpush1.msra.mxu0 %v201
    %519 = vmatprep.subr.mxu0 0.0
    %520 = vmatpush1.msra.mxu0 %v202
    %521 = vmatprep.subr.mxu0 0.0
    %522 = vmatpush1.msra.mxu0 %v203
    %523 = vmatprep.subr.mxu0 0.0
    %524 = vmatpush1.msra.mxu0 0.0
    %525 = vmatprep.subr.mxu0 0.0
    %526 = vmatpush1.msra.mxu0 0.0
    %527 = vmatprep.subr.mxu0 0.0
    %528 = vmatpush1.msra.mxu0 0.0
    %529 = vmatprep.subr.mxu0 0.0
    %530 = vmatpush1.msra.mxu0 0.0
    %531 = vmatprep.subr.mxu0 0.0
    %532 = vmatpush1.msra.mxu0 0.0
    %533 = vmatprep.subr.mxu0 0.0
    %534 = vmatpush1.msra.mxu0 0.0
    %535 = vmatprep.subr.mxu0 0.0
    %536 = vmatpush1.msra.mxu0 0.0
    %537 = vmatprep.subr.mxu0 0.0
    %538 = vmatpush1.msra.mxu0 0.0
    %539 = vmatprep.subr.mxu0 0.0
    %540 = vmatpush1.msra.mxu0 0.0
    %541 = vmatprep.subr.mxu0 0.0
    %542 = vmatpush1.msra.mxu0 0.0
    %543 = vmatprep.subr.mxu0 0.0
    %544 = vmatpush1.msra.mxu0 0.0
    %545 = vmatprep.subr.mxu0 0.0
    %546 = vmatpush1.msra.mxu0 0.0
    %547 = vmatprep.subr.mxu0 0.0
    %548 = vmatpush1.msra.mxu0 0.0
    %549 = vmatprep.subr.mxu0 0.0
    %550 = vmatpush1.msra.mxu0 0.0
    %551 = vmatprep.subr.mxu0 0.0
    %552 = vmatpush1.msra.mxu0 0.0
    %553 = vmatprep.subr.mxu0 0.0
    %554 = vmatpush1.msra.mxu0 0.0
    %555 = vmatprep.mubr.f32.mxu0 0.0
    %556 = vmatmul.mubr.f32.gmra.mrb[0].mxu0 %v59
    %v557 = vpop.f32.mrb[0].mxu0
    %v558 = vadd.f32 %v488, %v557
    %v559 = vpop.f32.mrb[0].mxu0
    %560 = vdwg.mxu0
    %v561 = vmax.f32 %v558, 0.0
    %v562 = vld [vmem:[%s1] sm:$0xff]
    %v563 = vmul.f32 %v561, %v562
    %v564 = vld [vmem:[%s9] sm:$0xff]
    %v565 = vld [vmem:[%s9 + $0x8] sm:$0xff]
    %v566 = vld [vmem:[%s9 + $0x10] sm:$0xff]
    %v567 = vld [vmem:[%s9 + $0x18] sm:$0xff]
    %v568 = vld [vmem:[%s9 + $0x20] sm:$0xff]
    %v569 = vld [vmem:[%s9 + $0x28] sm:$0xff]
    %v570 = vld [vmem:[%s9 + $0x30] sm:$0xff]
    %v571 = vld [vmem:[%s9 + $0x38] sm:$0xff]
    %v572 = vld [vmem:[%s9 + $0x40] sm:$0xff]
    %v573 = vld [vmem:[%s9 + $0x48] sm:$0xff]
    %v574 = vld [vmem:[%s9 + $0x50] sm:$0xff]
    %v575 = vld [vmem:[%s9 + $0x58] sm:$0xff]
    %v576 = vld [vmem:[%s2] sm:$0xff]
    %v577 = vld [vmem:[%s3] sm:$0xff]
    %v578 = vld [vmem:[%s4] sm:$0xff]
    %v579 = vld [vmem:[%s10] sm:$0x1]
    %581 = vset.pattern.permute.xlu0 0
    %582 = vperm.xlu0 %581, %v576
    %v583 = vpop.permute.xlu0 %582
    %v585 = vlaneseq
    %v586 = vshrl.u32 %v585, 7
    %v587 = vsub.s32 0, %v586
    %v588 = vrot.slane %v579, %v587
    %v589 = vmul.f32 %v583, %v588
    %vm590 = vcmask 785408
    %v592 = vsel %vm590, %v563, 0
    %594 = vmatprep.subr.mxu0 0.0
    %595 = vmatpush1.msra.mxu0 %v564
    %596 = vmatprep.subr.mxu0 0.0
    %597 = vmatpush1.msra.mxu0 %v565
    %598 = vmatprep.subr.mxu0 0.0
    %599 = vmatpush1.msra.mxu0 %v566
    %600 = vmatprep.subr.mxu0 0.0
    %601 = vmatpush1.msra.mxu0 %v567
    %602 = vmatprep.subr.mxu0 0.0
    %603 = vmatpush1.msra.mxu0 %v568
    %604 = vmatprep.subr.mxu0 0.0
    %605 = vmatpush1.msra.mxu0 %v569
    %606 = vmatprep.subr.mxu0 0.0
    %607 = vmatpush1.msra.mxu0 %v570
    %608 = vmatprep.subr.mxu0 0.0
    %609 = vmatpush1.msra.mxu0 %v571
    %610 = vmatprep.subr.mxu0 0.0
    %611 = vmatpush1.msra.mxu0 %v572
    %612 = vmatprep.subr.mxu0 0.0
    %613 = vmatpush1.msra.mxu0 %v573
    %614 = vmatprep.subr.mxu0 0.0
    %615 = vmatpush1.msra.mxu0 %v574
    %616 = vmatprep.subr.mxu0 0.0
    %617 = vmatpush1.msra.mxu0 %v575
    %618 = vmatprep.subr.mxu0 0.0
    %619 = vmatpush1.msra.mxu0 0.0
    %620 = vmatprep.subr.mxu0 0.0
    %621 = vmatpush1.msra.mxu0 0.0
    %622 = vmatprep.subr.mxu0 0.0
    %623 = vmatpush1.msra.mxu0 0.0
    %624 = vmatprep.subr.mxu0 0.0
    %625 = vmatpush1.msra.mxu0 0.0
    %626 = vmatprep.subr.mxu0 0.0
    %627 = vmatpush1.msra.mxu0 0.0
    %628 = vmatprep.subr.mxu0 0.0
    %629 = vmatpush1.msra.mxu0 0.0
    %630 = vmatprep.subr.mxu0 0.0
    %631 = vmatpush1.msra.mxu0 0.0
    %632 = vmatprep.subr.mxu0 0.0
    %633 = vmatpush1.msra.mxu0 0.0
    %634 = vmatprep.subr.mxu0 0.0
    %635 = vmatpush1.msra.mxu0 0.0
    %636 = vmatprep.subr.mxu0 0.0
    %637 = vmatpush1.msra.mxu0 0.0
    %638 = vmatprep.subr.mxu0 0.0
    %639 = vmatpush1.msra.mxu0 0.0
    %640 = vmatprep.subr.mxu0 0.0
    %641 = vmatpush1.msra.mxu0 0.0
    %642 = vmatprep.subr.mxu0 0.0
    %643 = vmatpush1.msra.mxu0 0.0
    %644 = vmatprep.subr.mxu0 0.0
    %645 = vmatpush1.msra.mxu0 0.0
    %646 = vmatprep.subr.mxu0 0.0
    %647 = vmatpush1.msra.mxu0 0.0
    %648 = vmatprep.subr.mxu0 0.0
    %649 = vmatpush1.msra.mxu0 0.0
    %650 = vmatprep.subr.mxu0 0.0
    %651 = vmatpush1.msra.mxu0 0.0
    %652 = vmatprep.subr.mxu0 0.0
    %653 = vmatpush1.msra.mxu0 0.0
    %654 = vmatprep.subr.mxu0 0.0
    %655 = vmatpush1.msra.mxu0 0.0
    %656 = vmatprep.subr.mxu0 0.0
    %657 = vmatpush1.msra.mxu0 0.0
    %658 = vmatprep.mubr.f32.mxu0 0.0
    %659 = vmatmul.mubr.f32.gmra.mrb[0].mxu0 %v592
    %v660 = vpop.f32.mrb[0].mxu0
    %v661 = vadd.f32 %v589, %v660
    %v662 = vpop.f32.mrb[0].mxu0
    %663 = vdwg.mxu0
    %v664 = vld [vmem:[%s10 + $0x1] sm:$0x1]
    %666 = vset.pattern.permute.xlu0 0
    %667 = vperm.xlu0 %666, %v577
    %v668 = vpop.permute.xlu0 %667
    %v670 = vlaneseq
    %v671 = vshrl.u32 %v670, 7
    %v672 = vsub.s32 0, %v671
    %v673 = vrot.slane %v664, %v672
    %v674 = vmul.f32 %v668, %v673
    %v675 = vadd.f32 %v661, %v674
    %v676 = vld [vmem:[%s10 + $0x2] sm:$0x1]
    %678 = vset.pattern.permute.xlu0 0
    %679 = vperm.xlu0 %678, %v578
    %v680 = vpop.permute.xlu0 %679
    %v682 = vlaneseq
    %v683 = vshrl.u32 %v682, 7
    %v684 = vsub.s32 0, %v683
    %v685 = vrot.slane %v676, %v684
    %v686 = vmul.f32 %v680, %v685
    %v687 = vadd.f32 %v675, %v686
    %v688 = vadd.f32 %v576, %v577
    %v689 = vadd.f32 %v688, %v578
    %v690 = vmax.f32 %v689, 1.0
    %692 = vset.pattern.permute.xlu0 0
    %693 = vperm.xlu0 %692, %v690
    %v694 = vpop.permute.xlu0 %693
    %v696 = vrcp.pop %v694
    %v697 = vmul.f32 %v687, %v696
    %v698 = vld [vmem:[%s11] sm:$0xff]
    %v699 = vld [vmem:[%s11 + $0x8] sm:$0xff]
    %v700 = vld [vmem:[%s11 + $0x10] sm:$0xff]
    %v701 = vld [vmem:[%s11 + $0x18] sm:$0xff]
    %v702 = vld [vmem:[%s12] sm:$0x1]
    %v704 = vlaneseq
    %v705 = vshrl.u32 %v704, 7
    %v706 = vsub.s32 0, %v705
    %v707 = vrot.slane %v702, %v706
    %vm709 = vcmask 261120
    %v711 = vsel %vm709, %v697, 0
    %713 = vmatprep.subr.mxu0 0.0
    %714 = vmatpush1.msra.mxu0 %v698
    %715 = vmatprep.subr.mxu0 0.0
    %716 = vmatpush1.msra.mxu0 %v699
    %717 = vmatprep.subr.mxu0 0.0
    %718 = vmatpush1.msra.mxu0 %v700
    %719 = vmatprep.subr.mxu0 0.0
    %720 = vmatpush1.msra.mxu0 %v701
    %721 = vmatprep.subr.mxu0 0.0
    %722 = vmatpush1.msra.mxu0 0.0
    %723 = vmatprep.subr.mxu0 0.0
    %724 = vmatpush1.msra.mxu0 0.0
    %725 = vmatprep.subr.mxu0 0.0
    %726 = vmatpush1.msra.mxu0 0.0
    %727 = vmatprep.subr.mxu0 0.0
    %728 = vmatpush1.msra.mxu0 0.0
    %729 = vmatprep.subr.mxu0 0.0
    %730 = vmatpush1.msra.mxu0 0.0
    %731 = vmatprep.subr.mxu0 0.0
    %732 = vmatpush1.msra.mxu0 0.0
    %733 = vmatprep.subr.mxu0 0.0
    %734 = vmatpush1.msra.mxu0 0.0
    %735 = vmatprep.subr.mxu0 0.0
    %736 = vmatpush1.msra.mxu0 0.0
    %737 = vmatprep.subr.mxu0 0.0
    %738 = vmatpush1.msra.mxu0 0.0
    %739 = vmatprep.subr.mxu0 0.0
    %740 = vmatpush1.msra.mxu0 0.0
    %741 = vmatprep.subr.mxu0 0.0
    %742 = vmatpush1.msra.mxu0 0.0
    %743 = vmatprep.subr.mxu0 0.0
    %744 = vmatpush1.msra.mxu0 0.0
    %745 = vmatprep.subr.mxu0 0.0
    %746 = vmatpush1.msra.mxu0 0.0
    %747 = vmatprep.subr.mxu0 0.0
    %748 = vmatpush1.msra.mxu0 0.0
    %749 = vmatprep.subr.mxu0 0.0
    %750 = vmatpush1.msra.mxu0 0.0
    %751 = vmatprep.subr.mxu0 0.0
    %752 = vmatpush1.msra.mxu0 0.0
    %753 = vmatprep.subr.mxu0 0.0
    %754 = vmatpush1.msra.mxu0 0.0
    %755 = vmatprep.subr.mxu0 0.0
    %756 = vmatpush1.msra.mxu0 0.0
    %757 = vmatprep.subr.mxu0 0.0
    %758 = vmatpush1.msra.mxu0 0.0
    %759 = vmatprep.subr.mxu0 0.0
    %760 = vmatpush1.msra.mxu0 0.0
    %761 = vmatprep.subr.mxu0 0.0
    %762 = vmatpush1.msra.mxu0 0.0
    %763 = vmatprep.subr.mxu0 0.0
    %764 = vmatpush1.msra.mxu0 0.0
    %765 = vmatprep.subr.mxu0 0.0
    %766 = vmatpush1.msra.mxu0 0.0
    %767 = vmatprep.subr.mxu0 0.0
    %768 = vmatpush1.msra.mxu0 0.0
    %769 = vmatprep.subr.mxu0 0.0
    %770 = vmatpush1.msra.mxu0 0.0
    %771 = vmatprep.subr.mxu0 0.0
    %772 = vmatpush1.msra.mxu0 0.0
    %773 = vmatprep.subr.mxu0 0.0
    %774 = vmatpush1.msra.mxu0 0.0
    %775 = vmatprep.subr.mxu0 0.0
    %776 = vmatpush1.msra.mxu0 0.0
    %777 = vmatprep.mubr.f32.mxu0 0.0
    %778 = vmatmul.mubr.f32.gmra.mrb[0].mxu0 %v711
    %v779 = vpop.f32.mrb[0].mxu0
    %v780 = vadd.f32 %v707, %v779
    %v781 = vpop.f32.mrb[0].mxu0
    %782 = vdwg.mxu0
    %v783 = vmax.f32 %v780, 0.0
    %s784 = scalar_lea.vmem %s11, 32
    %v785 = vld [vmem:[%s784] sm:$0xff]
    %v786 = vld [vmem:[%s784 + $0x8] sm:$0xff]
    %v787 = vld [vmem:[%s784 + $0x10] sm:$0xff]
    %v788 = vld [vmem:[%s784 + $0x18] sm:$0xff]
    %s789 = scalar_lea.vmem %s12, 1
    %v790 = vld [vmem:[%s789] sm:$0x1]
    %v792 = vlaneseq
    %v793 = vshrl.u32 %v792, 7
    %v794 = vsub.s32 0, %v793
    %v795 = vrot.slane %v790, %v794
    %v798 = vsel %vm709, %v783, 0
    %800 = vmatprep.subr.mxu0 0.0
    %801 = vmatpush1.msra.mxu0 %v785
    %802 = vmatprep.subr.mxu0 0.0
    %803 = vmatpush1.msra.mxu0 %v786
    %804 = vmatprep.subr.mxu0 0.0
    %805 = vmatpush1.msra.mxu0 %v787
    %806 = vmatprep.subr.mxu0 0.0
    %807 = vmatpush1.msra.mxu0 %v788
    %808 = vmatprep.subr.mxu0 0.0
    %809 = vmatpush1.msra.mxu0 0.0
    %810 = vmatprep.subr.mxu0 0.0
    %811 = vmatpush1.msra.mxu0 0.0
    %812 = vmatprep.subr.mxu0 0.0
    %813 = vmatpush1.msra.mxu0 0.0
    %814 = vmatprep.subr.mxu0 0.0
    %815 = vmatpush1.msra.mxu0 0.0
    %816 = vmatprep.subr.mxu0 0.0
    %817 = vmatpush1.msra.mxu0 0.0
    %818 = vmatprep.subr.mxu0 0.0
    %819 = vmatpush1.msra.mxu0 0.0
    %820 = vmatprep.subr.mxu0 0.0
    %821 = vmatpush1.msra.mxu0 0.0
    %822 = vmatprep.subr.mxu0 0.0
    %823 = vmatpush1.msra.mxu0 0.0
    %824 = vmatprep.subr.mxu0 0.0
    %825 = vmatpush1.msra.mxu0 0.0
    %826 = vmatprep.subr.mxu0 0.0
    %827 = vmatpush1.msra.mxu0 0.0
    %828 = vmatprep.subr.mxu0 0.0
    %829 = vmatpush1.msra.mxu0 0.0
    %830 = vmatprep.subr.mxu0 0.0
    %831 = vmatpush1.msra.mxu0 0.0
    %832 = vmatprep.subr.mxu0 0.0
    %833 = vmatpush1.msra.mxu0 0.0
    %834 = vmatprep.subr.mxu0 0.0
    %835 = vmatpush1.msra.mxu0 0.0
    %836 = vmatprep.subr.mxu0 0.0
    %837 = vmatpush1.msra.mxu0 0.0
    %838 = vmatprep.subr.mxu0 0.0
    %839 = vmatpush1.msra.mxu0 0.0
    %840 = vmatprep.subr.mxu0 0.0
    %841 = vmatpush1.msra.mxu0 0.0
    %842 = vmatprep.subr.mxu0 0.0
    %843 = vmatpush1.msra.mxu0 0.0
    %844 = vmatprep.subr.mxu0 0.0
    %845 = vmatpush1.msra.mxu0 0.0
    %846 = vmatprep.subr.mxu0 0.0
    %847 = vmatpush1.msra.mxu0 0.0
    %848 = vmatprep.subr.mxu0 0.0
    %849 = vmatpush1.msra.mxu0 0.0
    %850 = vmatprep.subr.mxu0 0.0
    %851 = vmatpush1.msra.mxu0 0.0
    %852 = vmatprep.subr.mxu0 0.0
    %853 = vmatpush1.msra.mxu0 0.0
    %854 = vmatprep.subr.mxu0 0.0
    %855 = vmatpush1.msra.mxu0 0.0
    %856 = vmatprep.subr.mxu0 0.0
    %857 = vmatpush1.msra.mxu0 0.0
    %858 = vmatprep.subr.mxu0 0.0
    %859 = vmatpush1.msra.mxu0 0.0
    %860 = vmatprep.subr.mxu0 0.0
    %861 = vmatpush1.msra.mxu0 0.0
    %862 = vmatprep.subr.mxu0 0.0
    %863 = vmatpush1.msra.mxu0 0.0
    %864 = vmatprep.mubr.f32.mxu0 0.0
    %865 = vmatmul.mubr.f32.gmra.mrb[0].mxu0 %v798
    %v866 = vpop.f32.mrb[0].mxu0
    %v867 = vadd.f32 %v795, %v866
    %v868 = vpop.f32.mrb[0].mxu0
    %869 = vdwg.mxu0
    %v870 = vmax.f32 %v867, 0.0
    %v871 = vld [vmem:[%s13] sm:$0xff]
    %v872 = vld [vmem:[%s13 + $0x8] sm:$0xff]
    %v873 = vld [vmem:[%s13 + $0x10] sm:$0xff]
    %v874 = vld [vmem:[%s13 + $0x18] sm:$0xff]
    %v875 = vld [vmem:[%s14] sm:$0x1]
    %v877 = vlaneseq
    %v878 = vshrl.u32 %v877, 7
    %v879 = vsub.s32 0, %v878
    %v880 = vrot.slane %v875, %v879
    %v883 = vsel %vm709, %v870, 0
    %885 = vmatprep.subr.mxu0 0.0
    %886 = vmatpush1.msra.mxu0 %v871
    %887 = vmatprep.subr.mxu0 0.0
    %888 = vmatpush1.msra.mxu0 %v872
    %889 = vmatprep.subr.mxu0 0.0
    %890 = vmatpush1.msra.mxu0 %v873
    %891 = vmatprep.subr.mxu0 0.0
    %892 = vmatpush1.msra.mxu0 %v874
    %893 = vmatprep.subr.mxu0 0.0
    %894 = vmatpush1.msra.mxu0 0.0
    %895 = vmatprep.subr.mxu0 0.0
    %896 = vmatpush1.msra.mxu0 0.0
    %897 = vmatprep.subr.mxu0 0.0
    %898 = vmatpush1.msra.mxu0 0.0
    %899 = vmatprep.subr.mxu0 0.0
    %900 = vmatpush1.msra.mxu0 0.0
    %901 = vmatprep.subr.mxu0 0.0
    %902 = vmatpush1.msra.mxu0 0.0
    %903 = vmatprep.subr.mxu0 0.0
    %904 = vmatpush1.msra.mxu0 0.0
    %905 = vmatprep.subr.mxu0 0.0
    %906 = vmatpush1.msra.mxu0 0.0
    %907 = vmatprep.subr.mxu0 0.0
    %908 = vmatpush1.msra.mxu0 0.0
    %909 = vmatprep.subr.mxu0 0.0
    %910 = vmatpush1.msra.mxu0 0.0
    %911 = vmatprep.subr.mxu0 0.0
    %912 = vmatpush1.msra.mxu0 0.0
    %913 = vmatprep.subr.mxu0 0.0
    %914 = vmatpush1.msra.mxu0 0.0
    %915 = vmatprep.subr.mxu0 0.0
    %916 = vmatpush1.msra.mxu0 0.0
    %917 = vmatprep.subr.mxu0 0.0
    %918 = vmatpush1.msra.mxu0 0.0
    %919 = vmatprep.subr.mxu0 0.0
    %920 = vmatpush1.msra.mxu0 0.0
    %921 = vmatprep.subr.mxu0 0.0
    %922 = vmatpush1.msra.mxu0 0.0
    %923 = vmatprep.subr.mxu0 0.0
    %924 = vmatpush1.msra.mxu0 0.0
    %925 = vmatprep.subr.mxu0 0.0
    %926 = vmatpush1.msra.mxu0 0.0
    %927 = vmatprep.subr.mxu0 0.0
    %928 = vmatpush1.msra.mxu0 0.0
    %929 = vmatprep.subr.mxu0 0.0
    %930 = vmatpush1.msra.mxu0 0.0
    %931 = vmatprep.subr.mxu0 0.0
    %932 = vmatpush1.msra.mxu0 0.0
    %933 = vmatprep.subr.mxu0 0.0
    %934 = vmatpush1.msra.mxu0 0.0
    %935 = vmatprep.subr.mxu0 0.0
    %936 = vmatpush1.msra.mxu0 0.0
    %937 = vmatprep.subr.mxu0 0.0
    %938 = vmatpush1.msra.mxu0 0.0
    %939 = vmatprep.subr.mxu0 0.0
    %940 = vmatpush1.msra.mxu0 0.0
    %941 = vmatprep.subr.mxu0 0.0
    %942 = vmatpush1.msra.mxu0 0.0
    %943 = vmatprep.subr.mxu0 0.0
    %944 = vmatpush1.msra.mxu0 0.0
    %945 = vmatprep.subr.mxu0 0.0
    %946 = vmatpush1.msra.mxu0 0.0
    %947 = vmatprep.subr.mxu0 0.0
    %948 = vmatpush1.msra.mxu0 0.0
    %949 = vmatprep.mubr.f32.mxu0 0.0
    %950 = vmatmul.mubr.f32.gmra.mrb[0].mxu0 %v883
    %v951 = vpop.f32.mrb[0].mxu0
    %v952 = vadd.f32 %v880, %v951
    %v953 = vpop.f32.mrb[0].mxu0
    %954 = vdwg.mxu0
    %vm955 = vcmask 23552
    %v956 = vsel %vm955, %v952, -inf
    %957 = vmax.xlane.f32.xlu0 %v956
    %v958 = vpop.xlane.xlu0 %957
    %v959 = vsub.f32 %v952, %v958
    %v960 = vmul.f32 %v959, 1.442695
    %v961 = vpow.pop %v960
    %v962 = vsel %vm955, %v961, 0.0
    %963 = vadd.xlane.f32.xlu0 %v962
    %v964 = vpop.xlane.xlu0 %963
    %v965 = vlog2.pop %v964
    %v966 = vmul.f32 %v965, 0.6931472
    %v967 = vadd.f32 %v958, %v966
    %v968 = vld [vmem:[%s6] sm:$0xff]
    %v969 = vmul.f32 %v968, %v952
    %v970 = vsel %vm955, %v969, 0.0
    %971 = vadd.xlane.f32.xlu0 %v970
    %v972 = vpop.xlane.xlu0 %971
    %v973 = vld [vmem:[%s5] sm:$0xff]
    %v974 = vsub.f32 %v967, %v972
    %v975 = vmul.f32 %v974, %v973
    %vm976 = vcmask 7168
    %v977 = vsel %vm976, %v973, 0.0
    %978 = vadd.xlane.f32.xlu0 %v977
    %v979 = vpop.xlane.xlu0 %978
    %v980 = vrot.slane %v979, 4
    %v981 = vadd.f32 %v979, %v980
    %v982 = vrot.slane %v981, 2
    %v983 = vadd.f32 %v981, %v982
    %v984 = vrot.slane %v983, 1
    %v985 = vadd.f32 %v983, %v984
    %s986 = vtos %v985
    %s987 = smax.f32 %s986, 1.0
    %v988 = vsel %vm976, %v975, 0.0
    %989 = vadd.xlane.f32.xlu0 %v988
    %v990 = vpop.xlane.xlu0 %989
    %v991 = vrot.slane %v990, 4
    %v992 = vadd.f32 %v990, %v991
    %v993 = vrot.slane %v992, 2
    %v994 = vadd.f32 %v992, %v993
    %v995 = vrot.slane %v994, 1
    %v996 = vadd.f32 %v994, %v995
    %s997 = vtos %v996
    %v998 = vstv %s987
    %v999 = vrcp.pop %v998
    %s1000 = vtos %v999
    %s1001 = smul.f32 %s997, %s1000
    %s1002 = scalar_lea.smem [#allocation2], 0
    %1003 = sst [smem:[%s1002]] %s1001
    // Predicated region
    $region62: #{adni_backbone_forward.1} parent=1 // pred_check
      _
    $region63: #{adni_backbone_forward.1} parent=1 // pred_check_branch
      %1005 = sbr.rel (0) target = $region65
    $region64: #{adni_backbone_forward.1} parent=1 // pred_region
      %s1007 = ssub.s32 16, 16
      %1008 = vsyncadd [#allocation3], %s1007
      %1011 = dma.smem_to_hbm [#allocation2], 16, %s15, [#allocation3]
    $region65: #{adni_backbone_forward.1} parent=1 // pred_fallthru
      _
    // Predicated region
    $region66: #{adni_backbone_forward.1} parent=1 // pred_check
      _
    $region67: #{adni_backbone_forward.1} parent=1 // pred_check_branch
      %1013 = sbr.rel (0) target = $region69
    $region68: #{adni_backbone_forward.1} parent=1 // pred_region
      %1014 = dma.done [#allocation3], 16
    $region69: #{adni_backbone_forward.1} parent=1 // pred_fallthru
      _
    %1015 = sfence
    %1016 = vsyncpa [#allocation3], 1

</llo_original>
